<compile_context>
chip_gen: v5e
topology: v5e:2x2
jax: 0.10.0
libtpu: 0.0.40
codegen_flags: <defaults>
</compile_context>

<pallas_src>
import functools

import jax
import jax.numpy as jnp
from jax.experimental import pallas as pl
from jax.experimental.pallas import tpu as pltpu


def _nearest_map(out_size: int, in_size: int) -> jnp.ndarray:
    # PyTorch 'nearest': src = floor(dst * in / out); exact in int arithmetic.
    return (jnp.arange(out_size, dtype=jnp.int32) * in_size) // out_size


def _one_hot_gather(h_in, w_in, h_out, w_out, dtype):
    """(h_in*w_in, h_out*w_out) one-hot: column (h,w) selects source (rm[h], cm[w])."""
    rm = _nearest_map(h_out, h_in)
    cm = _nearest_map(w_out, w_in)
    flat_src = (rm[:, None] * w_in + cm[None, :]).reshape(-1)      # (H*W,)
    rows = jnp.arange(h_in * w_in, dtype=jnp.int32)
    return (rows[:, None] == flat_src[None, :]).astype(dtype)


def _strip_bytes(th, w_out, c, out_isz, src_hw, src_iszs):
    tw = th * w_out
    b = 2 * 2 * c * tw * out_isz                      # last + out, double buffered
    for hw, isz in zip(src_hw, src_iszs):
        b += 2 * hw * tw * isz                        # one-hot gather block
        b += 2 * c * hw * isz                         # resident coarse source
    return b


def _choose_th(h_out, w_out, c, out_isz, src_hw, src_iszs,
               budget=24 * 1024 * 1024):
    """Largest row-strip TH that divides H, is lane-dense (TH*W % 128 == 0 or
    full extent), fits the VMEM budget, and (preferably) yields >= 2 strips."""
    cands = [th for th in range(1, h_out + 1)
             if h_out % th == 0 and ((th * w_out) % 128 == 0 or th == h_out)]
    fits = [th for th in cands
            if _strip_bytes(th, w_out, c, out_isz, src_hw, src_iszs) <= budget]
    multi = [th for th in fits if h_out // th >= 2]
    if multi:
        return max(multi)
    if fits:
        return max(fits)
    return min(cands)


def _cbfuse_kernel(num_sources, *refs):
    # refs layout:
    #   [0, S)      : one-hot gather matrices, block (h_i*w_i, TH*W), VMEM
    #   [S, 2S)     : coarse sources, block (1, C, h_i*w_i), VMEM (resident)
    #   [2S]        : full-resolution tensor, block (1, C, TH*W), VMEM
    #   [2S + 1]    : output, block (1, C, TH*W), VMEM
    s = num_sources
    g_refs = refs[:s]
    src_refs = refs[s:2 * s]
    last_ref = refs[2 * s]
    out_ref = refs[2 * s + 1]

    acc = last_ref[0].astype(jnp.float32)                          # (C, TH*W)
    for i in range(s):
        # One-hot selection == nearest H+W gather; exact (one nonzero per
        # output column, f32 accumulate, HIGHEST precision for f32 inputs).
        acc = acc + jnp.dot(src_refs[i][0], g_refs[i][...],
                            preferred_element_type=jnp.float32,
                            precision=jax.lax.Precision.HIGHEST)
    out_ref[0] = acc.astype(out_ref.dtype)


@jax.jit
def _cbfuse_fused(last, *selected):
    n, c, h_out, w_out = last.shape
    s = len(selected)
    src_hw = [x.shape[2] * x.shape[3] for x in selected]
    src_iszs = [x.dtype.itemsize for x in selected]
    out_isz = last.dtype.itemsize

    th = _choose_th(h_out, w_out, c, out_isz, src_hw, src_iszs)
    n_strips = h_out // th
    tw = th * w_out

    # Free (contiguous) reshapes only -- no transposes.
    last_flat = last.reshape(n, c, h_out * w_out)
    srcs_flat = [x.reshape(n, c, hw) for x, hw in zip(selected, src_hw)]
    gmats = [_one_hot_gather(x.shape[2], x.shape[3], h_out, w_out, x.dtype)
             for x in selected]

    g_specs = [pl.BlockSpec((g.shape[0], tw), lambda b, r: (0, r))
               for g in gmats]
    src_specs = [pl.BlockSpec((1, c, hw), lambda b, r: (b, 0, 0))
                 for hw in src_hw]
    last_spec = pl.BlockSpec((1, c, tw), lambda b, r: (b, 0, r))
    out_spec = pl.BlockSpec((1, c, tw), lambda b, r: (b, 0, r))

    est = _strip_bytes(th, w_out, c, out_isz, src_hw, src_iszs)
    vmem_limit = int(min(32 * 1024 * 1024, max(2 * est, 8 * 1024 * 1024)))

    out_flat = pl.pallas_call(
        functools.partial(_cbfuse_kernel, s),
        grid=(n, n_strips),
        in_specs=g_specs + src_specs + [last_spec],
        out_specs=out_spec,
        out_shape=jax.ShapeDtypeStruct((n, c, h_out * w_out), last.dtype),
        compiler_params=pltpu.CompilerParams(
            dimension_semantics=("parallel", "parallel"),
            vmem_limit_bytes=vmem_limit),
    )(*gmats, *srcs_flat, last_flat)

    return out_flat.reshape(n, c, h_out, w_out)


def cbfuse(xs, idx):
    """CBFuse forward.

    xs: list whose first len(xs)-1 entries are lists/tuples of NCHW arrays
        (entry idx[i] is selected from the i-th one) and whose last entry is
        an NCHW array defining the target spatial size.
    Returns an NCHW array with the shape of xs[-1].
    """
    last = xs[-1]
    selected = tuple(branch[idx[i]] for i, branch in enumerate(xs[:-1]))
    return _cbfuse_fused(last, *selected)


def cbfuse_reference(xs, idx):
    """Pure-JAX reference (same nearest rule as F.interpolate 'nearest')."""
    last = xs[-1]
    h_out, w_out = last.shape[2], last.shape[3]
    res = []
    for i, branch in enumerate(xs[:-1]):
        x = branch[idx[i]]
        rm = _nearest_map(h_out, x.shape[2])
        cm = _nearest_map(w_out, x.shape[3])
        res.append(x[:, :, rm, :][:, :, :, cm])
    return jnp.sum(jnp.stack(res + [last]), axis=0)


if __name__ == "__main__":
    key = jax.random.PRNGKey(0)
    n, c = 2, 4
    h, w = 16, 16
    idx = [1, 0]

    k = jax.random.split(key, 5)
    # xs[0]: CBLinear-style list at 1/4 target resolution; idx[0]=1 picks the
    # tensor whose channel count matches the fuse target.
    xs0 = [0.5 * jax.random.normal(k[0], (n, 8, h // 4, w // 4), jnp.float32),
           jax.random.normal(k[1], (n, c, h // 4, w // 4), jnp.float32)]
    # xs[1]: list at 1/2 target resolution; idx[1]=0 picks the matching one.
    xs1 = [jax.random.normal(k[2], (n, c, h // 2, w // 2), jnp.float32),
           0.5 * jax.random.normal(k[3], (n, 16, h // 2, w // 2), jnp.float32)]
    # xs[-1]: full-resolution tensor that defines target_size.
    x_last = jax.random.normal(k[4], (n, c, h, w), jnp.float32)

    xs = [xs0, xs1, x_last]

    out = cbfuse(xs, idx)
    out = jax.block_until_ready(out)

    ref = cbfuse_reference(xs, idx)
    assert out.shape == x_last.shape, out.shape
    assert bool(jnp.all(jnp.isfinite(out)))
    assert bool(jnp.allclose(out, ref, rtol=1e-5, atol=1e-5)), \
        float(jnp.max(jnp.abs(out - ref)))
    print("KERNEL_OK")
</pallas_src>

<mosaic_0001>
module attributes {stable_mosaic.version = 11 : i64} {
  func.func @_cbfuse_kernel(%arg0: i32, %arg1: i32, %arg2: memref<16x128xf32, #tpu.memory_space<vmem>>, %arg3: memref<64x128xf32, #tpu.memory_space<vmem>>, %arg4: memref<1x4x16xf32, #tpu.memory_space<vmem>>, %arg5: memref<1x4x64xf32, #tpu.memory_space<vmem>>, %arg6: memref<1x4x128xf32, #tpu.memory_space<vmem>>, %arg7: memref<1x4x128xf32, #tpu.memory_space<vmem>>) attributes {dimension_semantics = [#tpu.dimension_semantics<parallel>, #tpu.dimension_semantics<parallel>], iteration_bounds = array<i64: 2, 2>, scalar_prefetch = 0 : i64, scratch_operands = 0 : i64, tpu.core_type = #tpu.core_type<tc>, window_params = [{transform_indices = @transform_0, window_bounds = array<i64: 16, 128>}, {transform_indices = @transform_1, window_bounds = array<i64: 64, 128>}, {transform_indices = @transform_2, window_bounds = array<i64: 1, 4, 16>}, {transform_indices = @transform_3, window_bounds = array<i64: 1, 4, 64>}, {transform_indices = @transform_4, window_bounds = array<i64: 1, 4, 128>}, {transform_indices = @transform_5, window_bounds = array<i64: 1, 4, 128>}]} {
    %c0 = arith.constant 0 : index
    %c0_0 = arith.constant 0 : index
    %c0_1 = arith.constant 0 : index
    %0 = vector.load %arg6[%c0, %c0_0, %c0_1] : memref<1x4x128xf32, #tpu.memory_space<vmem>>, vector<1x4x128xf32>
    %1 = vector.shape_cast %0 : vector<1x4x128xf32> to vector<4x128xf32>
    %c0_2 = arith.constant 0 : index
    %c0_3 = arith.constant 0 : index
    %c0_4 = arith.constant 0 : index
    %2 = vector.load %arg4[%c0_2, %c0_3, %c0_4] : memref<1x4x16xf32, #tpu.memory_space<vmem>>, vector<1x4x16xf32>
    %3 = vector.shape_cast %2 : vector<1x4x16xf32> to vector<4x16xf32>
    %c0_5 = arith.constant 0 : index
    %c0_6 = arith.constant 0 : index
    %4 = vector.load %arg2[%c0_5, %c0_6] : memref<16x128xf32, #tpu.memory_space<vmem>>, vector<16x128xf32>
    %cst = arith.constant dense<0.000000e+00> : vector<4x128xf32>
    %5 = tpu.matmul %3, %4, %cst {dimension_numbers = #tpu.dot_dimension_numbers<[1], [0], [0], [1], [0, 0, 1, 1], [], []>, precision = #tpu.contract_precision<fp32>} : vector<4x16xf32>, vector<16x128xf32>, vector<4x128xf32> -> vector<4x128xf32>
    %6 = arith.addf %1, %5 : vector<4x128xf32>
    %c0_7 = arith.constant 0 : index
    %c0_8 = arith.constant 0 : index
    %c0_9 = arith.constant 0 : index
    %7 = vector.load %arg5[%c0_7, %c0_8, %c0_9] : memref<1x4x64xf32, #tpu.memory_space<vmem>>, vector<1x4x64xf32>
    %8 = vector.shape_cast %7 : vector<1x4x64xf32> to vector<4x64xf32>
    %c0_10 = arith.constant 0 : index
    %c0_11 = arith.constant 0 : index
    %9 = vector.load %arg3[%c0_10, %c0_11] : memref<64x128xf32, #tpu.memory_space<vmem>>, vector<64x128xf32>
    %cst_12 = arith.constant dense<0.000000e+00> : vector<4x128xf32>
    %10 = tpu.matmul %8, %9, %cst_12 {dimension_numbers = #tpu.dot_dimension_numbers<[1], [0], [0], [1], [0, 0, 1, 1], [], []>, precision = #tpu.contract_precision<fp32>} : vector<4x64xf32>, vector<64x128xf32>, vector<4x128xf32> -> vector<4x128xf32>
    %11 = arith.addf %6, %10 : vector<4x128xf32>
    %c0_13 = arith.constant 0 : index
    %c0_14 = arith.constant 0 : index
    %c0_15 = arith.constant 0 : index
    %12 = vector.load %arg7[%c0_13, %c0_14, %c0_15] : memref<1x4x128xf32, #tpu.memory_space<vmem>>, vector<1x4x128xf32>
    %13 = vector.shape_cast %12 : vector<1x4x128xf32> to vector<4x128xf32>
    %14 = vector.shape_cast %11 : vector<4x128xf32> to vector<1x4x128xf32>
    tpu.vector_store %arg7[%c0_13, %c0_14, %c0_15], %14 {strides = array<i32>} : memref<1x4x128xf32, #tpu.memory_space<vmem>>, vector<1x4x128xf32>,
    return
  }
  func.func @transform_0(%arg0: i32, %arg1: i32) -> (i32, i32) {
    %c0_i32 = arith.constant 0 : i32
    %c0_i32_0 = arith.constant 0 : i32
    return %c0_i32, %arg1 : i32, i32
  }
  func.func @transform_1(%arg0: i32, %arg1: i32) -> (i32, i32) {
    %c0_i32 = arith.constant 0 : i32
    %c0_i32_0 = arith.constant 0 : i32
    return %c0_i32, %arg1 : i32, i32
  }
  func.func @transform_2(%arg0: i32, %arg1: i32) -> (i32, i32, i32) {
    %c0_i32 = arith.constant 0 : i32
    %c0_i32_0 = arith.constant 0 : i32
    %c0_i32_1 = arith.constant 0 : i32
    return %arg0, %c0_i32, %c0_i32_0 : i32, i32, i32
  }
  func.func @transform_3(%arg0: i32, %arg1: i32) -> (i32, i32, i32) {
    %c0_i32 = arith.constant 0 : i32
    %c0_i32_0 = arith.constant 0 : i32
    %c0_i32_1 = arith.constant 0 : i32
    return %arg0, %c0_i32, %c0_i32_0 : i32, i32, i32
  }
  func.func @transform_4(%arg0: i32, %arg1: i32) -> (i32, i32, i32) {
    %c0_i32 = arith.constant 0 : i32
    %c0_i32_0 = arith.constant 0 : i32
    return %arg0, %c0_i32, %arg1 : i32, i32, i32
  }
  func.func @transform_5(%arg0: i32, %arg1: i32) -> (i32, i32, i32) {
    %c0_i32 = arith.constant 0 : i32
    %c0_i32_0 = arith.constant 0 : i32
    return %arg0, %c0_i32, %arg1 : i32, i32, i32
  }
}

</mosaic_0001>

<llo_original>
// kernel: _cbfuse_fused.1
$region0: #{_cbfuse_fused.1}
  #allocation0 [shape = 'u32[]', space=smem, size = 0x4, offset = 0x4, fixed_abs, tag = 'smem constant byte address 0x4 - core index']
  #allocation1 [shape = 'u32[72,128]{1,0:T(1,128)}', space=vmem, size = 0x9000, scoped, tag = 'internal scratch']
  %s0 = inlined_call_operand.vmem [shape: f32[16,256], index: 0, kind: input, shape index: {}]
  %s1 = inlined_call_operand.vmem [shape: f32[64,256], index: 1, kind: input, shape index: {}]
  %s2 = inlined_call_operand.vmem [shape: f32[2,4,16], index: 2, kind: input, shape index: {}]
  %s3 = inlined_call_operand.vmem [shape: f32[2,4,64], index: 3, kind: input, shape index: {}]
  %s4 = inlined_call_operand.vmem [shape: f32[2,4,256], index: 4, kind: input, shape index: {}]
  %s5 = inlined_call_operand.vmem [shape: f32[2,4,256], index: 5, kind: output, shape index: {}]
  %s6 = sld [smem:[#allocation0]]
  $region129: #{_cbfuse_fused.1} parent=0
    _
  %s8 = ssub.s32 1, %s6
  %s9 = scalar_select 0, %s8, %s6
  $region1: #{_cbfuse_fused.1} parent=0
    #allocation2 [shape = 'u8[16384]{0}', space=vmem, size = 0x4000, scoped, tag = 'input window, operand 0']
    #allocation3 [shape = 'u8[65536]{0}', space=vmem, size = 0x10000, scoped, tag = 'input window, operand 1']
    loop: start=0, step=1, limit=6
    $region2: #{_cbfuse_fused.1} parent=1 // loop_pre_header
      _
    $region3: #{_cbfuse_fused.1} parent=1 // loop_header
      %s11 = sphi 0, %s15
      %p12 = scmp.ge.s32.totalorder %s11, 6
      %s18 = sphi 0, %s30
      %s19 = sphi 0, %s26
      %s20 = sphi 0, %s18
      %s21 = sphi 0, %s19
      %s22 = sphi 0, %s20
      %s23 = sphi 0, %s21
      %s33 = sphi 0, %s35
      %s36 = sphi 0, %s33
      %s37 = sphi 0, %s36
      %s53 = sphi 0, %s37
      %s59 = sphi 0, %s61
      %s62 = sphi 0, %s59
      %s63 = sphi 0, %s62
      %s79 = sphi 0, %s63
      %s85 = sphi 0, %s87
      %s88 = sphi 0, %s85
      %s89 = sphi 0, %s88
      %s105 = sphi 0, %s89
      %s111 = sphi 0, %s113
      %s114 = sphi 0, %s111
      %s115 = sphi 0, %s114
      %s131 = sphi 0, %s115
      %s139 = sphi 0, %s141
      %s142 = sphi 0, %s139
      %s143 = sphi 0, %s142
      %s159 = sphi 0, %s143
      %s167 = sphi 0, %s169
      %s170 = sphi 0, %s167
      %s171 = sphi 0, %s170
      %s187 = sphi 0, %s171
    $region4: #{_cbfuse_fused.1} parent=1 // loop_header_branch
      %14 = sbr.rel (%p12) target = $region8
    $region5: #{_cbfuse_fused.1} parent=1 // loop_body
      %s16 = ssub.s32 %s11, 1
      %s17 = ssub.s32 %s11, 2
      %s24 = sadd.s32 1, %s19
      %p25 = scmp.ge.s32.totalorder %s24, 2
      %s26 = scalar_select %p25, 0, %s24
      %s27 = sadd.s32 1, %s18
      %s28 = scalar_select %p25, %s27, %s18
      %p29 = scmp.ge.s32.totalorder %s28, 2
      %s30 = scalar_select %p29, 0, %s28
      %s31 = ssub.s32 %s19, %s26
      %p32 = scmp.eq.s32.totalorder %s31, 0
      %s34 = sadd.s32 %s33, 1
      %s35 = scalar_select %p32, %s33, %s34
      %p38 = pneg %p32
      %p39 = scmp.eq.s32.totalorder %s11, 3
      %p40 = por %p38, %p39
      %p41 = scmp.ne.s32.totalorder %s33, %s36
      %p42 = scmp.eq.s32.totalorder %s11, 0
      %p43 = por %p41, %p42
      %p44 = scmp.ne.s32.totalorder %s33, %s36
      %p45 = scmp.eq.s32.totalorder %s16, 3
      %p46 = por %p44, %p45
      %p47 = scmp.ne.s32.totalorder %s36, %s37
      %p48 = scmp.eq.s32.totalorder %s16, 0
      %p49 = por %p47, %p48
      %p50 = scmp.ne.s32.totalorder %s36, %s37
      %p51 = scmp.eq.s32.totalorder %s17, 3
      %p52 = por %p50, %p51
      %p54 = scmp.ne.s32.totalorder %s37, %s53
      %p55 = scmp.eq.s32.totalorder %s17, 0
      %p56 = por %p54, %p55
      %s57 = ssub.s32 %s19, %s26
      %p58 = scmp.eq.s32.totalorder %s57, 0
      %s60 = sadd.s32 %s59, 1
      %s61 = scalar_select %p58, %s59, %s60
      %p64 = pneg %p58
      %p65 = scmp.eq.s32.totalorder %s11, 3
      %p66 = por %p64, %p65
      %p67 = scmp.ne.s32.totalorder %s59, %s62
      %p68 = scmp.eq.s32.totalorder %s11, 0
      %p69 = por %p67, %p68
      %p70 = scmp.ne.s32.totalorder %s59, %s62
      %p71 = scmp.eq.s32.totalorder %s16, 3
      %p72 = por %p70, %p71
      %p73 = scmp.ne.s32.totalorder %s62, %s63
      %p74 = scmp.eq.s32.totalorder %s16, 0
      %p75 = por %p73, %p74
      %p76 = scmp.ne.s32.totalorder %s62, %s63
      %p77 = scmp.eq.s32.totalorder %s17, 3
      %p78 = por %p76, %p77
      %p80 = scmp.ne.s32.totalorder %s63, %s79
      %p81 = scmp.eq.s32.totalorder %s17, 0
      %p82 = por %p80, %p81
      %s83 = ssub.s32 %s18, %s30
      %p84 = scmp.eq.s32.totalorder %s83, 0
      %s86 = sadd.s32 %s85, 1
      %s87 = scalar_select %p84, %s85, %s86
      %p90 = pneg %p84
      %p91 = scmp.eq.s32.totalorder %s11, 3
      %p92 = por %p90, %p91
      %p93 = scmp.ne.s32.totalorder %s85, %s88
      %p94 = scmp.eq.s32.totalorder %s11, 0
      %p95 = por %p93, %p94
      %p96 = scmp.ne.s32.totalorder %s85, %s88
      %p97 = scmp.eq.s32.totalorder %s16, 3
      %p98 = por %p96, %p97
      %p99 = scmp.ne.s32.totalorder %s88, %s89
      %p100 = scmp.eq.s32.totalorder %s16, 0
      %p101 = por %p99, %p100
      %p102 = scmp.ne.s32.totalorder %s88, %s89
      %p103 = scmp.eq.s32.totalorder %s17, 3
      %p104 = por %p102, %p103
      %p106 = scmp.ne.s32.totalorder %s89, %s105
      %p107 = scmp.eq.s32.totalorder %s17, 0
      %p108 = por %p106, %p107
      %s109 = ssub.s32 %s18, %s30
      %p110 = scmp.eq.s32.totalorder %s109, 0
      %s112 = sadd.s32 %s111, 1
      %s113 = scalar_select %p110, %s111, %s112
      %p116 = pneg %p110
      %p117 = scmp.eq.s32.totalorder %s11, 3
      %p118 = por %p116, %p117
      %p119 = scmp.ne.s32.totalorder %s111, %s114
      %p120 = scmp.eq.s32.totalorder %s11, 0
      %p121 = por %p119, %p120
      %p122 = scmp.ne.s32.totalorder %s111, %s114
      %p123 = scmp.eq.s32.totalorder %s16, 3
      %p124 = por %p122, %p123
      %p125 = scmp.ne.s32.totalorder %s114, %s115
      %p126 = scmp.eq.s32.totalorder %s16, 0
      %p127 = por %p125, %p126
      %p128 = scmp.ne.s32.totalorder %s114, %s115
      %p129 = scmp.eq.s32.totalorder %s17, 3
      %p130 = por %p128, %p129
      %p132 = scmp.ne.s32.totalorder %s115, %s131
      %p133 = scmp.eq.s32.totalorder %s17, 0
      %p134 = por %p132, %p133
      %s135 = ssub.s32 %s18, %s30
      %s136 = ssub.s32 %s19, %s26
      %s137 = sor.u32 %s135, %s136
      %p138 = scmp.eq.s32.totalorder %s137, 0
      %s140 = sadd.s32 %s139, 1
      %s141 = scalar_select %p138, %s139, %s140
      %p144 = pneg %p138
      %p145 = scmp.eq.s32.totalorder %s11, 3
      %p146 = por %p144, %p145
      %p147 = scmp.ne.s32.totalorder %s139, %s142
      %p148 = scmp.eq.s32.totalorder %s11, 0
      %p149 = por %p147, %p148
      %p150 = scmp.ne.s32.totalorder %s139, %s142
      %p151 = scmp.eq.s32.totalorder %s16, 3
      %p152 = por %p150, %p151
      %p153 = scmp.ne.s32.totalorder %s142, %s143
      %p154 = scmp.eq.s32.totalorder %s16, 0
      %p155 = por %p153, %p154
      %p156 = scmp.ne.s32.totalorder %s142, %s143
      %p157 = scmp.eq.s32.totalorder %s17, 3
      %p158 = por %p156, %p157
      %p160 = scmp.ne.s32.totalorder %s143, %s159
      %p161 = scmp.eq.s32.totalorder %s17, 0
      %p162 = por %p160, %p161
      %s163 = ssub.s32 %s18, %s30
      %s164 = ssub.s32 %s19, %s26
      %s165 = sor.u32 %s163, %s164
      %p166 = scmp.eq.s32.totalorder %s165, 0
      %s168 = sadd.s32 %s167, 1
      %s169 = scalar_select %p166, %s167, %s168
      %p172 = pneg %p166
      %p173 = scmp.eq.s32.totalorder %s11, 3
      %p174 = por %p172, %p173
      %p175 = scmp.ne.s32.totalorder %s167, %s170
      %p176 = scmp.eq.s32.totalorder %s11, 0
      %p177 = por %p175, %p176
      %p178 = scmp.ne.s32.totalorder %s167, %s170
      %p179 = scmp.eq.s32.totalorder %s16, 3
      %p180 = por %p178, %p179
      %p181 = scmp.ne.s32.totalorder %s170, %s171
      %p182 = scmp.eq.s32.totalorder %s16, 0
      %p183 = por %p181, %p182
      %p184 = scmp.ne.s32.totalorder %s170, %s171
      %p185 = scmp.eq.s32.totalorder %s17, 3
      %p186 = por %p184, %p185
      %p188 = scmp.ne.s32.totalorder %s171, %s187
      %p189 = scmp.eq.s32.totalorder %s17, 0
      %p190 = por %p188, %p189
      %p191 = scmp.le.s32.totalorder 1, %s11
      %p192 = scmp.lt.s32.totalorder %s11, 5
      %p193 = pnand %p191, %p192
      %p194 = pneg %p193
      // Predicated region
      $region9: #{_cbfuse_fused.1} parent=5 // pred_check
        _
      $region10: #{_cbfuse_fused.1} parent=5 // pred_check_branch
        %196 = sbr.rel (%p193) target = $region12
      $region11: #{_cbfuse_fused.1} parent=5 // pred_region
        %s197 = ssub.s32 %s11, 1
      $region12: #{_cbfuse_fused.1} parent=5 // pred_fallthru
        _
      %p198 = scmp.lt.s32.totalorder %s11, 4
      // Predicated region
      $region13: #{_cbfuse_fused.1} parent=5 // pred_check
        %p199 = pneg %p198
      $region14: #{_cbfuse_fused.1} parent=5 // pred_check_branch
        %201 = sbr.rel (%p199) target = $region16
      $region15: #{_cbfuse_fused.1} parent=5 // pred_region
        // Predicated region
        $region17: #{_cbfuse_fused.1} parent=15 // pred_check
          %p202 = pneg %p43
        $region18: #{_cbfuse_fused.1} parent=15 // pred_check_branch
          %204 = sbr.rel (%p202) target = $region20
        $region19: #{_cbfuse_fused.1} parent=15 // pred_region
          %s205 = sand.u32 %s33, 1
          %s206 = sand.u32 %s33, 1
          %s207 = smul.addr %s206, 16
          %s208 = scalar_lea.vmem [#allocation2], %s207
          %s209 = smul.addr %s19, 8
          %s210 = scalar_lea.vmem %s0, %s209
          // Predicated region
          $region21: #{_cbfuse_fused.1} parent=19 // pred_check
            _
          $region22: #{_cbfuse_fused.1} parent=19 // pred_check_branch
            %212 = sbr.rel (0) target = $region24
          $region23: #{_cbfuse_fused.1} parent=19 // pred_region
            // Predicated region
            $region25: #{_cbfuse_fused.1} parent=23 // pred_check
              _
            $region26: #{_cbfuse_fused.1} parent=23 // pred_check_branch
              %214 = sbr.rel (0) target = $region28
            $region27: #{_cbfuse_fused.1} parent=23 // pred_region
              // Predicated region
              $region40: #{_cbfuse_fused.1} parent=27 // pred_check
                _
              $region41: #{_cbfuse_fused.1} parent=27 // pred_check_branch
                %232 = sbr.rel (0) target = $region43
              $region42: #{_cbfuse_fused.1} parent=27 // pred_region
                loop: start=0, step=1, limit=1
                $region44: #{_cbfuse_fused.1} parent=42 // loop_pre_header
                  _
                $region45: #{_cbfuse_fused.1} parent=42 // loop_header
                  %s234 = sphi 0, %s238
                  %p235 = scmp.ge.s32.totalorder %s234, 1
                  %s239 = sphi %s210, %s210
                  %s240 = sphi %s208, %s208
                $region46: #{_cbfuse_fused.1} parent=42 // loop_header_branch
                  %237 = sbr.rel (%p235) target = $region50
                $region47: #{_cbfuse_fused.1} parent=42 // loop_body
                  %v241 = vld [vmem:[%s239] sm:$0xff]
                  %242 = vst [vmem:[%s240] sm:$0xff] %v241
                  %v243 = vld [vmem:[%s239 + $0x10] sm:$0xff]
                  %244 = vst [vmem:[%s240 + $0x8] sm:$0xff] %v243
                $region48: #{_cbfuse_fused.1} parent=42 // loop_footer
                  %s238 = sadd.s32 1, %s234
                $region49: #{_cbfuse_fused.1} parent=42 // loop_footer_branch
                  %233 = sbr.rel target = $region45
                $region50: #{_cbfuse_fused.1} parent=42 // loop_exit
                  _
              $region43: #{_cbfuse_fused.1} parent=27 // pred_fallthru
                _
              // Predicated region
              $region51: #{_cbfuse_fused.1} parent=27 // pred_check
                _
              $region52: #{_cbfuse_fused.1} parent=27 // pred_check_branch
                %246 = sbr.rel target = $region54
              $region53: #{_cbfuse_fused.1} parent=27 // pred_region
                _
              $region54: #{_cbfuse_fused.1} parent=27 // pred_fallthru
                _
            $region28: #{_cbfuse_fused.1} parent=23 // pred_fallthru
              _
            // Predicated region
            $region29: #{_cbfuse_fused.1} parent=23 // pred_check
              _
            $region30: #{_cbfuse_fused.1} parent=23 // pred_check_branch
              %216 = sbr.rel target = $region32
            $region31: #{_cbfuse_fused.1} parent=23 // pred_region
              %s218 = ssub.s32 256, 1
              loop: start=0, step=1, limit=1
              $region33: #{_cbfuse_fused.1} parent=31 // loop_pre_header
                _
              $region34: #{_cbfuse_fused.1} parent=31 // loop_header
                %s220 = sphi 0, %s224
                %p221 = scmp.ge.s32.totalorder %s220, 1
                %s225 = sphi %s210, %s210
                %s226 = sphi %s208, %s208
              $region35: #{_cbfuse_fused.1} parent=31 // loop_header_branch
                %223 = sbr.rel (%p221) target = $region39
              $region36: #{_cbfuse_fused.1} parent=31 // loop_body
                %v227 = vld [vmem:[%s225] sm:%s218]
                %228 = vst [vmem:[%s226] sm:%s218] %v227
                %v229 = vld [vmem:[%s225 + $0x10] sm:%s218]
                %230 = vst [vmem:[%s226 + $0x8] sm:%s218] %v229
              $region37: #{_cbfuse_fused.1} parent=31 // loop_footer
                %s224 = sadd.s32 1, %s220
              $region38: #{_cbfuse_fused.1} parent=31 // loop_footer_branch
                %219 = sbr.rel target = $region34
              $region39: #{_cbfuse_fused.1} parent=31 // loop_exit
                _
            $region32: #{_cbfuse_fused.1} parent=23 // pred_fallthru
              _
          $region24: #{_cbfuse_fused.1} parent=19 // pred_fallthru
            _
          %247 = vnop
        $region20: #{_cbfuse_fused.1} parent=15 // pred_fallthru
          _
        // Predicated region
        $region55: #{_cbfuse_fused.1} parent=15 // pred_check
          %p248 = pneg %p69
        $region56: #{_cbfuse_fused.1} parent=15 // pred_check_branch
          %250 = sbr.rel (%p248) target = $region58
        $region57: #{_cbfuse_fused.1} parent=15 // pred_region
          %s251 = sand.u32 %s59, 1
          %s252 = sand.u32 %s59, 1
          %s253 = smul.addr %s252, 64
          %s254 = scalar_lea.vmem [#allocation3], %s253
          %s255 = smul.addr %s19, 8
          %s256 = scalar_lea.vmem %s1, %s255
          // Predicated region
          $region59: #{_cbfuse_fused.1} parent=57 // pred_check
            _
          $region60: #{_cbfuse_fused.1} parent=57 // pred_check_branch
            %258 = sbr.rel (0) target = $region62
          $region61: #{_cbfuse_fused.1} parent=57 // pred_region
            // Predicated region
            $region63: #{_cbfuse_fused.1} parent=61 // pred_check
              _
            $region64: #{_cbfuse_fused.1} parent=61 // pred_check_branch
              %260 = sbr.rel (0) target = $region66
            $region65: #{_cbfuse_fused.1} parent=61 // pred_region
              // Predicated region
              $region78: #{_cbfuse_fused.1} parent=65 // pred_check
                _
              $region79: #{_cbfuse_fused.1} parent=65 // pred_check_branch
                %290 = sbr.rel (0) target = $region81
              $region80: #{_cbfuse_fused.1} parent=65 // pred_region
                loop: start=0, step=1, limit=1
                $region82: #{_cbfuse_fused.1} parent=80 // loop_pre_header
                  _
                $region83: #{_cbfuse_fused.1} parent=80 // loop_header
                  %s292 = sphi 0, %s296
                  %p293 = scmp.ge.s32.totalorder %s292, 1
                  %s297 = sphi %s256, %s256
                  %s298 = sphi %s254, %s254
                $region84: #{_cbfuse_fused.1} parent=80 // loop_header_branch
                  %295 = sbr.rel (%p293) target = $region88
                $region85: #{_cbfuse_fused.1} parent=80 // loop_body
                  %v299 = vld [vmem:[%s297] sm:$0xff]
                  %300 = vst [vmem:[%s298] sm:$0xff] %v299
                  %v301 = vld [vmem:[%s297 + $0x10] sm:$0xff]
                  %302 = vst [vmem:[%s298 + $0x8] sm:$0xff] %v301
                  %v303 = vld [vmem:[%s297 + $0x20] sm:$0xff]
                  %304 = vst [vmem:[%s298 + $0x10] sm:$0xff] %v303
                  %v305 = vld [vmem:[%s297 + $0x30] sm:$0xff]
                  %306 = vst [vmem:[%s298 + $0x18] sm:$0xff] %v305
                  %v307 = vld [vmem:[%s297 + $0x40] sm:$0xff]
                  %308 = vst [vmem:[%s298 + $0x20] sm:$0xff] %v307
                  %v309 = vld [vmem:[%s297 + $0x50] sm:$0xff]
                  %310 = vst [vmem:[%s298 + $0x28] sm:$0xff] %v309
                  %v311 = vld [vmem:[%s297 + $0x60] sm:$0xff]
                  %312 = vst [vmem:[%s298 + $0x30] sm:$0xff] %v311
                  %v313 = vld [vmem:[%s297 + $0x70] sm:$0xff]
                  %314 = vst [vmem:[%s298 + $0x38] sm:$0xff] %v313
                $region86: #{_cbfuse_fused.1} parent=80 // loop_footer
                  %s296 = sadd.s32 1, %s292
                $region87: #{_cbfuse_fused.1} parent=80 // loop_footer_branch
                  %291 = sbr.rel target = $region83
                $region88: #{_cbfuse_fused.1} parent=80 // loop_exit
                  _
              $region81: #{_cbfuse_fused.1} parent=65 // pred_fallthru
                _
              // Predicated region
              $region89: #{_cbfuse_fused.1} parent=65 // pred_check
                _
              $region90: #{_cbfuse_fused.1} parent=65 // pred_check_branch
                %316 = sbr.rel target = $region92
              $region91: #{_cbfuse_fused.1} parent=65 // pred_region
                _
              $region92: #{_cbfuse_fused.1} parent=65 // pred_fallthru
                _
            $region66: #{_cbfuse_fused.1} parent=61 // pred_fallthru
              _
            // Predicated region
            $region67: #{_cbfuse_fused.1} parent=61 // pred_check
              _
            $region68: #{_cbfuse_fused.1} parent=61 // pred_check_branch
              %262 = sbr.rel target = $region70
            $region69: #{_cbfuse_fused.1} parent=61 // pred_region
              %s264 = ssub.s32 256, 1
              loop: start=0, step=1, limit=1
              $region71: #{_cbfuse_fused.1} parent=69 // loop_pre_header
                _
              $region72: #{_cbfuse_fused.1} parent=69 // loop_header
                %s266 = sphi 0, %s270
                %p267 = scmp.ge.s32.totalorder %s266, 1
                %s271 = sphi %s256, %s256
                %s272 = sphi %s254, %s254
              $region73: #{_cbfuse_fused.1} parent=69 // loop_header_branch
                %269 = sbr.rel (%p267) target = $region77
              $region74: #{_cbfuse_fused.1} parent=69 // loop_body
                %v273 = vld [vmem:[%s271] sm:%s264]
                %274 = vst [vmem:[%s272] sm:%s264] %v273
                %v275 = vld [vmem:[%s271 + $0x10] sm:%s264]
                %276 = vst [vmem:[%s272 + $0x8] sm:%s264] %v275
                %v277 = vld [vmem:[%s271 + $0x20] sm:%s264]
                %278 = vst [vmem:[%s272 + $0x10] sm:%s264] %v277
                %v279 = vld [vmem:[%s271 + $0x30] sm:%s264]
                %280 = vst [vmem:[%s272 + $0x18] sm:%s264] %v279
                %v281 = vld [vmem:[%s271 + $0x40] sm:%s264]
                %282 = vst [vmem:[%s272 + $0x20] sm:%s264] %v281
                %v283 = vld [vmem:[%s271 + $0x50] sm:%s264]
                %284 = vst [vmem:[%s272 + $0x28] sm:%s264] %v283
                %v285 = vld [vmem:[%s271 + $0x60] sm:%s264]
                %286 = vst [vmem:[%s272 + $0x30] sm:%s264] %v285
                %v287 = vld [vmem:[%s271 + $0x70] sm:%s264]
                %288 = vst [vmem:[%s272 + $0x38] sm:%s264] %v287
              $region75: #{_cbfuse_fused.1} parent=69 // loop_footer
                %s270 = sadd.s32 1, %s266
              $region76: #{_cbfuse_fused.1} parent=69 // loop_footer_branch
                %265 = sbr.rel target = $region72
              $region77: #{_cbfuse_fused.1} parent=69 // loop_exit
                _
            $region70: #{_cbfuse_fused.1} parent=61 // pred_fallthru
              _
          $region62: #{_cbfuse_fused.1} parent=57 // pred_fallthru
            _
          %317 = vnop
        $region58: #{_cbfuse_fused.1} parent=15 // pred_fallthru
          _
        // Predicated region
        $region93: #{_cbfuse_fused.1} parent=15 // pred_check
          %p318 = pneg %p95
        $region94: #{_cbfuse_fused.1} parent=15 // pred_check_branch
          %320 = sbr.rel (%p318) target = $region96
        $region95: #{_cbfuse_fused.1} parent=15 // pred_region
          %p321 = scmp.lt.s32.totalorder %s18, 1
          %s322 = scalar_select %p321, %s18, 1
          %s323 = smul.addr %s322, 4
          %s324 = scalar_lea.vmem %s2, %s323
        $region96: #{_cbfuse_fused.1} parent=15 // pred_fallthru
          _
        // Predicated region
        $region97: #{_cbfuse_fused.1} parent=15 // pred_check
          %p325 = pneg %p121
        $region98: #{_cbfuse_fused.1} parent=15 // pred_check_branch
          %327 = sbr.rel (%p325) target = $region100
        $region99: #{_cbfuse_fused.1} parent=15 // pred_region
          %p328 = scmp.lt.s32.totalorder %s18, 1
          %s329 = scalar_select %p328, %s18, 1
          %s330 = smul.addr %s329, 4
          %s331 = scalar_lea.vmem %s3, %s330
        $region100: #{_cbfuse_fused.1} parent=15 // pred_fallthru
          _
        // Predicated region
        $region101: #{_cbfuse_fused.1} parent=15 // pred_check
          %p332 = pneg %p149
        $region102: #{_cbfuse_fused.1} parent=15 // pred_check_branch
          %334 = sbr.rel (%p332) target = $region104
        $region103: #{_cbfuse_fused.1} parent=15 // pred_region
          %p335 = scmp.lt.s32.totalorder %s18, 1
          %s336 = scalar_select %p335, %s18, 1
          %p337 = scmp.lt.s32.totalorder %s19, 1
          %s338 = scalar_select %p337, %s19, 1
          %s339 = smul.addr %s336, 2
          %s340 = sadd.s32 %s338, %s339
          %s341 = smul.addr %s340, 4
          %s342 = scalar_lea.vmem %s4, %s341
        $region104: #{_cbfuse_fused.1} parent=15 // pred_fallthru
          _
      $region16: #{_cbfuse_fused.1} parent=5 // pred_fallthru
        _
      %p343 = scmp.le.s32.totalorder 1, %s11
      %p344 = scmp.lt.s32.totalorder %s11, 5
      %p345 = pnand %p343, %p344
      %p346 = pneg %p345
      // Predicated region
      $region105: #{_cbfuse_fused.1} parent=5 // pred_check
        _
      $region106: #{_cbfuse_fused.1} parent=5 // pred_check_branch
        %348 = sbr.rel (%p345) target = $region108
      $region107: #{_cbfuse_fused.1} parent=5 // pred_region
        %s349 = ssub.s32 %s11, 1
        %s350 = sand.u32 %s36, 1
        %s351 = sand.u32 %s36, 1
        %s352 = smul.addr %s351, 16
        %s353 = scalar_lea.vmem [#allocation2], %s352
        // Predicated region
        $region109: #{_cbfuse_fused.1} parent=107 // pred_check
          %p354 = pneg %p49
        $region110: #{_cbfuse_fused.1} parent=107 // pred_check_branch
          %356 = sbr.rel (%p354) target = $region112
        $region111: #{_cbfuse_fused.1} parent=107 // pred_region
          _
        $region112: #{_cbfuse_fused.1} parent=107 // pred_fallthru
          _
        %s357 = sand.u32 %s62, 1
        %s358 = sand.u32 %s62, 1
        %s359 = smul.addr %s358, 64
        %s360 = scalar_lea.vmem [#allocation3], %s359
        // Predicated region
        $region113: #{_cbfuse_fused.1} parent=107 // pred_check
          %p361 = pneg %p75
        $region114: #{_cbfuse_fused.1} parent=107 // pred_check_branch
          %363 = sbr.rel (%p361) target = $region116
        $region115: #{_cbfuse_fused.1} parent=107 // pred_region
          _
        $region116: #{_cbfuse_fused.1} parent=107 // pred_fallthru
          _
        %s364 = sand.u32 %s36, 1
        %s365 = sand.u32 %s36, 1
        %s366 = smul.addr %s365, 16
        %s367 = scalar_lea.vmem [#allocation2], %s366
        %p368 = pneg %p49
        %p369 = pneg %p46
        %s370 = sand.u32 %s62, 1
        %s371 = sand.u32 %s62, 1
        %s372 = smul.addr %s371, 64
        %s373 = scalar_lea.vmem [#allocation3], %s372
        %p374 = pneg %p75
        %p375 = pneg %p72
        %p376 = scmp.lt.s32.totalorder %s20, 1
        %s377 = scalar_select %p376, %s20, 1
        %s378 = smul.addr %s377, 4
        %s379 = scalar_lea.vmem %s2, %s378
        %p380 = pneg %p101
        %p381 = pneg %p98
        %p382 = scmp.lt.s32.totalorder %s20, 1
        %s383 = scalar_select %p382, %s20, 1
        %s384 = smul.addr %s383, 4
        %s385 = scalar_lea.vmem %s3, %s384
        %p386 = pneg %p127
        %p387 = pneg %p124
        %p388 = scmp.lt.s32.totalorder %s20, 1
        %s389 = scalar_select %p388, %s20, 1
        %p390 = scmp.lt.s32.totalorder %s21, 1
        %s391 = scalar_select %p390, %s21, 1
        %s392 = smul.addr %s389, 2
        %s393 = sadd.s32 %s391, %s392
        %s394 = smul.addr %s393, 4
        %s395 = scalar_lea.vmem %s4, %s394
        %p396 = pneg %p155
        %p397 = pneg %p152
        %p398 = pneg %p183
        %p399 = pneg %p180
        %p400 = scmp.lt.s32.totalorder %s20, 1
        %s401 = scalar_select %p400, %s20, 1
        %p402 = scmp.lt.s32.totalorder %s21, 1
        %s403 = scalar_select %p402, %s21, 1
        %s404 = smul.addr %s401, 2
        %s405 = sadd.s32 %s403, %s404
        %s406 = smul.addr %s405, 4
        %s407 = scalar_lea.vmem %s5, %s406
        %p408 = scmp.lt.s32.totalorder %s20, 1
        %s409 = scalar_select %p408, %s20, 1
        %s410 = smul.addr %s409, 4
        %s411 = scalar_lea.vmem %s2, %s410
        %p412 = scmp.lt.s32.totalorder %s20, 1
        %s413 = scalar_select %p412, %s20, 1
        %s414 = smul.addr %s413, 4
        %s415 = scalar_lea.vmem %s3, %s414
        %p416 = scmp.lt.s32.totalorder %s20, 1
        %s417 = scalar_select %p416, %s20, 1
        %p418 = scmp.lt.s32.totalorder %s21, 1
        %s419 = scalar_select %p418, %s21, 1
        %s420 = smul.addr %s417, 2
        %s421 = sadd.s32 %s419, %s420
        %s422 = smul.addr %s421, 4
        %s423 = scalar_lea.vmem %s4, %s422
        %p424 = scmp.lt.s32.totalorder %s20, 1
        %s425 = scalar_select %p424, %s20, 1
        %p426 = scmp.lt.s32.totalorder %s21, 1
        %s427 = scalar_select %p426, %s21, 1
        %s428 = smul.addr %s425, 2
        %s429 = sadd.s32 %s427, %s428
        %s430 = smul.addr %s429, 4
        %s431 = scalar_lea.vmem %s5, %s430
        %v432 = vld [vmem:[%s423] sm:$0xf]
        %v433 = vld [vmem:[%s411] sm:$0xf]
        %v434 = vld [vmem:[%s353] sm:$0xff]
        %v435 = vld [vmem:[%s353 + $0x8] sm:$0xff]
        %vm436 = vcmask 130048
        %v438 = vsel %vm436, %v433, 0
        %440 = vmatpush.msra.mxu0 0.0
        %441 = vmatpush.msra.mxu0 0.0
        %442 = vmatpush.msra.mxu0 0.0
        %443 = vmatpush.msra.mxu0 0.0
        %444 = vmatpush.msra.mxu0 0.0
        %445 = vmatpush.msra.mxu0 0.0
        %446 = vmatpush.msra.mxu0 0.0
        %447 = vmatpush.msra.mxu0 0.0
        %448 = vmatpush.msra.mxu0 0.0
        %449 = vmatpush.msra.mxu0 0.0
        %450 = vmatpush.msra.mxu0 0.0
        %451 = vmatpush.msra.mxu0 0.0
        %452 = vmatpush.msra.mxu0 0.0
        %453 = vmatpush.msra.mxu0 0.0
        %v454 = vand.u32 %v435, 4294901760
        %455 = vmatpush.msra.mxu0 %v454
        %v456 = vand.u32 %v434, 4294901760
        %457 = vmatpush.msra.mxu0 %v456
        %v458 = vand.u32 %v438, 4294901760
        %v459 = vsub.f32 %v438, %v458
        %v460 = vand.u32 %v459, 4294901760
        %v461 = vsub.f32 %v459, %v460
        %v462 = vand.u32 %v461, 4294901760
        %463 = vmatmul.f32.gmra.mxu0 %v462
        %v464 = vpop.f32.mrf.mxu0
        %v465 = vadd.f32 0.0, %v464
        %466 = vdwg.mxu0
        %467 = vmatpush.msra.mxu0 0.0
        %468 = vmatpush.msra.mxu0 0.0
        %469 = vmatpush.msra.mxu0 0.0
        %470 = vmatpush.msra.mxu0 0.0
        %471 = vmatpush.msra.mxu0 0.0
        %472 = vmatpush.msra.mxu0 0.0
        %473 = vmatpush.msra.mxu0 0.0
        %474 = vmatpush.msra.mxu0 0.0
        %475 = vmatpush.msra.mxu0 0.0
        %476 = vmatpush.msra.mxu0 0.0
        %477 = vmatpush.msra.mxu0 0.0
        %478 = vmatpush.msra.mxu0 0.0
        %479 = vmatpush.msra.mxu0 0.0
        %480 = vmatpush.msra.mxu0 0.0
        %v481 = vand.u32 %v435, 4294901760
        %v482 = vsub.f32 %v435, %v481
        %v483 = vand.u32 %v482, 4294901760
        %v484 = vsub.f32 %v482, %v483
        %v485 = vand.u32 %v484, 4294901760
        %486 = vmatpush.msra.mxu0 %v485
        %v487 = vand.u32 %v434, 4294901760
        %v488 = vsub.f32 %v434, %v487
        %v489 = vand.u32 %v488, 4294901760
        %v490 = vsub.f32 %v488, %v489
        %v491 = vand.u32 %v490, 4294901760
        %492 = vmatpush.msra.mxu0 %v491
        %v493 = vand.u32 %v438, 4294901760
        %494 = vmatmul.f32.gmra.mxu0 %v493
        %v495 = vpop.f32.mrf.mxu0
        %v496 = vadd.f32 %v465, %v495
        %497 = vdwg.mxu0
        %498 = vmatpush.msra.mxu0 0.0
        %499 = vmatpush.msra.mxu0 0.0
        %500 = vmatpush.msra.mxu0 0.0
        %501 = vmatpush.msra.mxu0 0.0
        %502 = vmatpush.msra.mxu0 0.0
        %503 = vmatpush.msra.mxu0 0.0
        %504 = vmatpush.msra.mxu0 0.0
        %505 = vmatpush.msra.mxu0 0.0
        %506 = vmatpush.msra.mxu0 0.0
        %507 = vmatpush.msra.mxu0 0.0
        %508 = vmatpush.msra.mxu0 0.0
        %509 = vmatpush.msra.mxu0 0.0
        %510 = vmatpush.msra.mxu0 0.0
        %511 = vmatpush.msra.mxu0 0.0
        %v512 = vand.u32 %v435, 4294901760
        %v513 = vsub.f32 %v435, %v512
        %514 = vmatpush.msra.mxu0 %v513
        %v515 = vand.u32 %v434, 4294901760
        %v516 = vsub.f32 %v434, %v515
        %517 = vmatpush.msra.mxu0 %v516
        %v518 = vand.u32 %v438, 4294901760
        %v519 = vsub.f32 %v438, %v518
        %520 = vmatmul.f32.gmra.mxu0 %v519
        %v521 = vpop.f32.mrf.mxu0
        %v522 = vadd.f32 %v496, %v521
        %523 = vdwg.mxu0
        %524 = vmatpush.msra.mxu0 0.0
        %525 = vmatpush.msra.mxu0 0.0
        %526 = vmatpush.msra.mxu0 0.0
        %527 = vmatpush.msra.mxu0 0.0
        %528 = vmatpush.msra.mxu0 0.0
        %529 = vmatpush.msra.mxu0 0.0
        %530 = vmatpush.msra.mxu0 0.0
        %531 = vmatpush.msra.mxu0 0.0
        %532 = vmatpush.msra.mxu0 0.0
        %533 = vmatpush.msra.mxu0 0.0
        %534 = vmatpush.msra.mxu0 0.0
        %535 = vmatpush.msra.mxu0 0.0
        %536 = vmatpush.msra.mxu0 0.0
        %537 = vmatpush.msra.mxu0 0.0
        %v538 = vand.u32 %v435, 4294901760
        %539 = vmatpush.msra.mxu0 %v538
        %v540 = vand.u32 %v434, 4294901760
        %541 = vmatpush.msra.mxu0 %v540
        %v542 = vand.u32 %v438, 4294901760
        %v543 = vsub.f32 %v438, %v542
        %v544 = vand.u32 %v543, 4294901760
        %545 = vmatmul.f32.gmra.mxu0 %v544
        %v546 = vpop.f32.mrf.mxu0
        %v547 = vadd.f32 %v522, %v546
        %548 = vdwg.mxu0
        %549 = vmatpush.msra.mxu0 0.0
        %550 = vmatpush.msra.mxu0 0.0
        %551 = vmatpush.msra.mxu0 0.0
        %552 = vmatpush.msra.mxu0 0.0
        %553 = vmatpush.msra.mxu0 0.0
        %554 = vmatpush.msra.mxu0 0.0
        %555 = vmatpush.msra.mxu0 0.0
        %556 = vmatpush.msra.mxu0 0.0
        %557 = vmatpush.msra.mxu0 0.0
        %558 = vmatpush.msra.mxu0 0.0
        %559 = vmatpush.msra.mxu0 0.0
        %560 = vmatpush.msra.mxu0 0.0
        %561 = vmatpush.msra.mxu0 0.0
        %562 = vmatpush.msra.mxu0 0.0
        %v563 = vand.u32 %v435, 4294901760
        %v564 = vsub.f32 %v435, %v563
        %v565 = vand.u32 %v564, 4294901760
        %566 = vmatpush.msra.mxu0 %v565
        %v567 = vand.u32 %v434, 4294901760
        %v568 = vsub.f32 %v434, %v567
        %v569 = vand.u32 %v568, 4294901760
        %570 = vmatpush.msra.mxu0 %v569
        %v571 = vand.u32 %v438, 4294901760
        %572 = vmatmul.f32.gmra.mxu0 %v571
        %v573 = vpop.f32.mrf.mxu0
        %v574 = vadd.f32 %v547, %v573
        %575 = vdwg.mxu0
        %576 = vmatpush.msra.mxu0 0.0
        %577 = vmatpush.msra.mxu0 0.0
        %578 = vmatpush.msra.mxu0 0.0
        %579 = vmatpush.msra.mxu0 0.0
        %580 = vmatpush.msra.mxu0 0.0
        %581 = vmatpush.msra.mxu0 0.0
        %582 = vmatpush.msra.mxu0 0.0
        %583 = vmatpush.msra.mxu0 0.0
        %584 = vmatpush.msra.mxu0 0.0
        %585 = vmatpush.msra.mxu0 0.0
        %586 = vmatpush.msra.mxu0 0.0
        %587 = vmatpush.msra.mxu0 0.0
        %588 = vmatpush.msra.mxu0 0.0
        %589 = vmatpush.msra.mxu0 0.0
        %v590 = vand.u32 %v435, 4294901760
        %591 = vmatpush.msra.mxu0 %v590
        %v592 = vand.u32 %v434, 4294901760
        %593 = vmatpush.msra.mxu0 %v592
        %v594 = vand.u32 %v438, 4294901760
        %595 = vmatmul.f32.gmra.mxu0 %v594
        %v596 = vpop.f32.mrf.mxu0
        %v597 = vadd.f32 %v574, %v596
        %598 = vdwg.mxu0
        %v599 = vadd.f32 %v432, %v597
        %v600 = vld [vmem:[%s415] sm:$0xf]
        %v601 = vld [vmem:[%s360] sm:$0xff]
        %v602 = vld [vmem:[%s360 + $0x8] sm:$0xff]
        %v603 = vld [vmem:[%s360 + $0x10] sm:$0xff]
        %v604 = vld [vmem:[%s360 + $0x18] sm:$0xff]
        %v605 = vld [vmem:[%s360 + $0x20] sm:$0xff]
        %v606 = vld [vmem:[%s360 + $0x28] sm:$0xff]
        %v607 = vld [vmem:[%s360 + $0x30] sm:$0xff]
        %v608 = vld [vmem:[%s360 + $0x38] sm:$0xff]
        %vm609 = vcmask 523264
        %v611 = vsel %vm609, %v600, 0
        %613 = vmatpush.msra.mxu0 0.0
        %614 = vmatpush.msra.mxu0 0.0
        %615 = vmatpush.msra.mxu0 0.0
        %616 = vmatpush.msra.mxu0 0.0
        %617 = vmatpush.msra.mxu0 0.0
        %618 = vmatpush.msra.mxu0 0.0
        %619 = vmatpush.msra.mxu0 0.0
        %620 = vmatpush.msra.mxu0 0.0
        %v621 = vand.u32 %v608, 4294901760
        %622 = vmatpush.msra.mxu0 %v621
        %v623 = vand.u32 %v607, 4294901760
        %624 = vmatpush.msra.mxu0 %v623
        %v625 = vand.u32 %v606, 4294901760
        %626 = vmatpush.msra.mxu0 %v625
        %v627 = vand.u32 %v605, 4294901760
        %628 = vmatpush.msra.mxu0 %v627
        %v629 = vand.u32 %v604, 4294901760
        %630 = vmatpush.msra.mxu0 %v629
        %v631 = vand.u32 %v603, 4294901760
        %632 = vmatpush.msra.mxu0 %v631
        %v633 = vand.u32 %v602, 4294901760
        %634 = vmatpush.msra.mxu0 %v633
        %v635 = vand.u32 %v601, 4294901760
        %636 = vmatpush.msra.mxu0 %v635
        %v637 = vand.u32 %v611, 4294901760
        %v638 = vsub.f32 %v611, %v637
        %v639 = vand.u32 %v638, 4294901760
        %v640 = vsub.f32 %v638, %v639
        %v641 = vand.u32 %v640, 4294901760
        %642 = vmatmul.f32.gmra.mxu0 %v641
        %v643 = vpop.f32.mrf.mxu0
        %v644 = vadd.f32 0.0, %v643
        %645 = vdwg.mxu0
        %646 = vmatpush.msra.mxu0 0.0
        %647 = vmatpush.msra.mxu0 0.0
        %648 = vmatpush.msra.mxu0 0.0
        %649 = vmatpush.msra.mxu0 0.0
        %650 = vmatpush.msra.mxu0 0.0
        %651 = vmatpush.msra.mxu0 0.0
        %652 = vmatpush.msra.mxu0 0.0
        %653 = vmatpush.msra.mxu0 0.0
        %v654 = vand.u32 %v608, 4294901760
        %v655 = vsub.f32 %v608, %v654
        %v656 = vand.u32 %v655, 4294901760
        %v657 = vsub.f32 %v655, %v656
        %v658 = vand.u32 %v657, 4294901760
        %659 = vmatpush.msra.mxu0 %v658
        %v660 = vand.u32 %v607, 4294901760
        %v661 = vsub.f32 %v607, %v660
        %v662 = vand.u32 %v661, 4294901760
        %v663 = vsub.f32 %v661, %v662
        %v664 = vand.u32 %v663, 4294901760
        %665 = vmatpush.msra.mxu0 %v664
        %v666 = vand.u32 %v606, 4294901760
        %v667 = vsub.f32 %v606, %v666
        %v668 = vand.u32 %v667, 4294901760
        %v669 = vsub.f32 %v667, %v668
        %v670 = vand.u32 %v669, 4294901760
        %671 = vmatpush.msra.mxu0 %v670
        %v672 = vand.u32 %v605, 4294901760
        %v673 = vsub.f32 %v605, %v672
        %v674 = vand.u32 %v673, 4294901760
        %v675 = vsub.f32 %v673, %v674
        %v676 = vand.u32 %v675, 4294901760
        %677 = vmatpush.msra.mxu0 %v676
        %v678 = vand.u32 %v604, 4294901760
        %v679 = vsub.f32 %v604, %v678
        %v680 = vand.u32 %v679, 4294901760
        %v681 = vsub.f32 %v679, %v680
        %v682 = vand.u32 %v681, 4294901760
        %683 = vmatpush.msra.mxu0 %v682
        %v684 = vand.u32 %v603, 4294901760
        %v685 = vsub.f32 %v603, %v684
        %v686 = vand.u32 %v685, 4294901760
        %v687 = vsub.f32 %v685, %v686
        %v688 = vand.u32 %v687, 4294901760
        %689 = vmatpush.msra.mxu0 %v688
        %v690 = vand.u32 %v602, 4294901760
        %v691 = vsub.f32 %v602, %v690
        %v692 = vand.u32 %v691, 4294901760
        %v693 = vsub.f32 %v691, %v692
        %v694 = vand.u32 %v693, 4294901760
        %695 = vmatpush.msra.mxu0 %v694
        %v696 = vand.u32 %v601, 4294901760
        %v697 = vsub.f32 %v601, %v696
        %v698 = vand.u32 %v697, 4294901760
        %v699 = vsub.f32 %v697, %v698
        %v700 = vand.u32 %v699, 4294901760
        %701 = vmatpush.msra.mxu0 %v700
        %v702 = vand.u32 %v611, 4294901760
        %703 = vmatmul.f32.gmra.mxu0 %v702
        %v704 = vpop.f32.mrf.mxu0
        %v705 = vadd.f32 %v644, %v704
        %706 = vdwg.mxu0
        %707 = vmatpush.msra.mxu0 0.0
        %708 = vmatpush.msra.mxu0 0.0
        %709 = vmatpush.msra.mxu0 0.0
        %710 = vmatpush.msra.mxu0 0.0
        %711 = vmatpush.msra.mxu0 0.0
        %712 = vmatpush.msra.mxu0 0.0
        %713 = vmatpush.msra.mxu0 0.0
        %714 = vmatpush.msra.mxu0 0.0
        %v715 = vand.u32 %v608, 4294901760
        %v716 = vsub.f32 %v608, %v715
        %717 = vmatpush.msra.mxu0 %v716
        %v718 = vand.u32 %v607, 4294901760
        %v719 = vsub.f32 %v607, %v718
        %720 = vmatpush.msra.mxu0 %v719
        %v721 = vand.u32 %v606, 4294901760
        %v722 = vsub.f32 %v606, %v721
        %723 = vmatpush.msra.mxu0 %v722
        %v724 = vand.u32 %v605, 4294901760
        %v725 = vsub.f32 %v605, %v724
        %726 = vmatpush.msra.mxu0 %v725
        %v727 = vand.u32 %v604, 4294901760
        %v728 = vsub.f32 %v604, %v727
        %729 = vmatpush.msra.mxu0 %v728
        %v730 = vand.u32 %v603, 4294901760
        %v731 = vsub.f32 %v603, %v730
        %732 = vmatpush.msra.mxu0 %v731
        %v733 = vand.u32 %v602, 4294901760
        %v734 = vsub.f32 %v602, %v733
        %735 = vmatpush.msra.mxu0 %v734
        %v736 = vand.u32 %v601, 4294901760
        %v737 = vsub.f32 %v601, %v736
        %738 = vmatpush.msra.mxu0 %v737
        %v739 = vand.u32 %v611, 4294901760
        %v740 = vsub.f32 %v611, %v739
        %741 = vmatmul.f32.gmra.mxu0 %v740
        %v742 = vpop.f32.mrf.mxu0
        %v743 = vadd.f32 %v705, %v742
        %744 = vdwg.mxu0
        %745 = vmatpush.msra.mxu0 0.0
        %746 = vmatpush.msra.mxu0 0.0
        %747 = vmatpush.msra.mxu0 0.0
        %748 = vmatpush.msra.mxu0 0.0
        %749 = vmatpush.msra.mxu0 0.0
        %750 = vmatpush.msra.mxu0 0.0
        %751 = vmatpush.msra.mxu0 0.0
        %752 = vmatpush.msra.mxu0 0.0
        %v753 = vand.u32 %v608, 4294901760
        %754 = vmatpush.msra.mxu0 %v753
        %v755 = vand.u32 %v607, 4294901760
        %756 = vmatpush.msra.mxu0 %v755
        %v757 = vand.u32 %v606, 4294901760
        %758 = vmatpush.msra.mxu0 %v757
        %v759 = vand.u32 %v605, 4294901760
        %760 = vmatpush.msra.mxu0 %v759
        %v761 = vand.u32 %v604, 4294901760
        %762 = vmatpush.msra.mxu0 %v761
        %v763 = vand.u32 %v603, 4294901760
        %764 = vmatpush.msra.mxu0 %v763
        %v765 = vand.u32 %v602, 4294901760
        %766 = vmatpush.msra.mxu0 %v765
        %v767 = vand.u32 %v601, 4294901760
        %768 = vmatpush.msra.mxu0 %v767
        %v769 = vand.u32 %v611, 4294901760
        %v770 = vsub.f32 %v611, %v769
        %v771 = vand.u32 %v770, 4294901760
        %772 = vmatmul.f32.gmra.mxu0 %v771
        %v773 = vpop.f32.mrf.mxu0
        %v774 = vadd.f32 %v743, %v773
        %775 = vdwg.mxu0
        %776 = vmatpush.msra.mxu0 0.0
        %777 = vmatpush.msra.mxu0 0.0
        %778 = vmatpush.msra.mxu0 0.0
        %779 = vmatpush.msra.mxu0 0.0
        %780 = vmatpush.msra.mxu0 0.0
        %781 = vmatpush.msra.mxu0 0.0
        %782 = vmatpush.msra.mxu0 0.0
        %783 = vmatpush.msra.mxu0 0.0
        %v784 = vand.u32 %v608, 4294901760
        %v785 = vsub.f32 %v608, %v784
        %v786 = vand.u32 %v785, 4294901760
        %787 = vmatpush.msra.mxu0 %v786
        %v788 = vand.u32 %v607, 4294901760
        %v789 = vsub.f32 %v607, %v788
        %v790 = vand.u32 %v789, 4294901760
        %791 = vmatpush.msra.mxu0 %v790
        %v792 = vand.u32 %v606, 4294901760
        %v793 = vsub.f32 %v606, %v792
        %v794 = vand.u32 %v793, 4294901760
        %795 = vmatpush.msra.mxu0 %v794
        %v796 = vand.u32 %v605, 4294901760
        %v797 = vsub.f32 %v605, %v796
        %v798 = vand.u32 %v797, 4294901760
        %799 = vmatpush.msra.mxu0 %v798
        %v800 = vand.u32 %v604, 4294901760
        %v801 = vsub.f32 %v604, %v800
        %v802 = vand.u32 %v801, 4294901760
        %803 = vmatpush.msra.mxu0 %v802
        %v804 = vand.u32 %v603, 4294901760
        %v805 = vsub.f32 %v603, %v804
        %v806 = vand.u32 %v805, 4294901760
        %807 = vmatpush.msra.mxu0 %v806
        %v808 = vand.u32 %v602, 4294901760
        %v809 = vsub.f32 %v602, %v808
        %v810 = vand.u32 %v809, 4294901760
        %811 = vmatpush.msra.mxu0 %v810
        %v812 = vand.u32 %v601, 4294901760
        %v813 = vsub.f32 %v601, %v812
        %v814 = vand.u32 %v813, 4294901760
        %815 = vmatpush.msra.mxu0 %v814
        %v816 = vand.u32 %v611, 4294901760
        %817 = vmatmul.f32.gmra.mxu0 %v816
        %v818 = vpop.f32.mrf.mxu0
        %v819 = vadd.f32 %v774, %v818
        %820 = vdwg.mxu0
        %821 = vmatpush.msra.mxu0 0.0
        %822 = vmatpush.msra.mxu0 0.0
        %823 = vmatpush.msra.mxu0 0.0
        %824 = vmatpush.msra.mxu0 0.0
        %825 = vmatpush.msra.mxu0 0.0
        %826 = vmatpush.msra.mxu0 0.0
        %827 = vmatpush.msra.mxu0 0.0
        %828 = vmatpush.msra.mxu0 0.0
        %v829 = vand.u32 %v608, 4294901760
        %830 = vmatpush.msra.mxu0 %v829
        %v831 = vand.u32 %v607, 4294901760
        %832 = vmatpush.msra.mxu0 %v831
        %v833 = vand.u32 %v606, 4294901760
        %834 = vmatpush.msra.mxu0 %v833
        %v835 = vand.u32 %v605, 4294901760
        %836 = vmatpush.msra.mxu0 %v835
        %v837 = vand.u32 %v604, 4294901760
        %838 = vmatpush.msra.mxu0 %v837
        %v839 = vand.u32 %v603, 4294901760
        %840 = vmatpush.msra.mxu0 %v839
        %v841 = vand.u32 %v602, 4294901760
        %842 = vmatpush.msra.mxu0 %v841
        %v843 = vand.u32 %v601, 4294901760
        %844 = vmatpush.msra.mxu0 %v843
        %v845 = vand.u32 %v611, 4294901760
        %846 = vmatmul.f32.gmra.mxu0 %v845
        %v847 = vpop.f32.mrf.mxu0
        %v848 = vadd.f32 %v819, %v847
        %849 = vdwg.mxu0
        %v850 = vadd.f32 %v599, %v848
        %851 = vst [vmem:[%s431] sm:$0xf] %v850
        %p852 = scmp.lt.s32.totalorder %s20, 1
        %s853 = scalar_select %p852, %s20, 1
        %p854 = scmp.lt.s32.totalorder %s21, 1
        %s855 = scalar_select %p854, %s21, 1
        %s856 = smul.addr %s853, 2
        %s857 = sadd.s32 %s855, %s856
        %s858 = smul.addr %s857, 4
        %s859 = scalar_lea.vmem %s5, %s858
        // Predicated region
        $region117: #{_cbfuse_fused.1} parent=107 // pred_check
          %p860 = pneg %p180
        $region118: #{_cbfuse_fused.1} parent=107 // pred_check_branch
          %862 = sbr.rel (%p860) target = $region120
        $region119: #{_cbfuse_fused.1} parent=107 // pred_region
          _
        $region120: #{_cbfuse_fused.1} parent=107 // pred_fallthru
          _
      $region108: #{_cbfuse_fused.1} parent=5 // pred_fallthru
        _
      %p863 = scmp.le.s32.totalorder 2, %s11
      // Predicated region
      $region121: #{_cbfuse_fused.1} parent=5 // pred_check
        %p864 = pneg %p863
      $region122: #{_cbfuse_fused.1} parent=5 // pred_check_branch
        %866 = sbr.rel (%p864) target = $region124
      $region123: #{_cbfuse_fused.1} parent=5 // pred_region
        %s867 = ssub.s32 %s11, 2
        // Predicated region
        $region125: #{_cbfuse_fused.1} parent=123 // pred_check
          %p868 = pneg %p186
        $region126: #{_cbfuse_fused.1} parent=123 // pred_check_branch
          %870 = sbr.rel (%p868) target = $region128
        $region127: #{_cbfuse_fused.1} parent=123 // pred_region
          %p871 = scmp.lt.s32.totalorder %s22, 1
          %s872 = scalar_select %p871, %s22, 1
          %p873 = scmp.lt.s32.totalorder %s23, 1
          %s874 = scalar_select %p873, %s23, 1
          %s875 = smul.addr %s872, 2
          %s876 = sadd.s32 %s874, %s875
          %s877 = smul.addr %s876, 4
          %s878 = scalar_lea.vmem %s5, %s877
        $region128: #{_cbfuse_fused.1} parent=123 // pred_fallthru
          _
      $region124: #{_cbfuse_fused.1} parent=5 // pred_fallthru
        _
    $region6: #{_cbfuse_fused.1} parent=1 // loop_footer
      %s15 = sadd.s32 1, %s11
    $region7: #{_cbfuse_fused.1} parent=1 // loop_footer_branch
      %10 = sbr.rel target = $region3
    $region8: #{_cbfuse_fused.1} parent=1 // loop_exit
      _

</llo_original>
